<compile_context>
chip_gen: v7x
topology: tpu7x:2x2x1
jax: 0.10.0
libtpu: 0.0.40
codegen_flags: <defaults>
</compile_context>

<pallas_src>
import jax
import jax.numpy as jnp
from jax.experimental import pallas as pl
from jax.experimental.pallas import tpu as pltpu


def _default_compute_dtype():
    """bf16 on v6e / v7x (bf16 VPU/EUP, high HBM BW), f32 on older chips."""
    try:
        kind = jax.devices()[0].device_kind.lower()
    except Exception:
        return jnp.float32
    if any(tag in kind for tag in ("v6", "v7", "7x")):
        return jnp.bfloat16
    return jnp.float32


def _lau_kernel(ub_ref, weff_ref, qb_ref, w2t_ref, b2_ref, w3_ref, b3_ref,
                out_ref):
    """One grid step: a (B, tile_t) block of attention scores, feature-major.

    ub_ref   : (B, E, tile_t)   user-behavior block, T on the lane axis
    weff_ref : (B, H1, E)       per-row folded layer-1 weights (Wub + q*Wqub)^T
    qb_ref   : (B, H1, 1) f32   per-row folded layer-1 bias (q@Wq + b1)^T
    w2t_ref  : (H2, H1)         W2^T
    b2_ref   : (H2, 1)  f32
    w3_ref   : (1, H2)          final projection W3^T as a row
    b3_ref   : (1,)     f32     scalar in SMEM
    out_ref  : (B, tile_t) f32  lane-dense score block
    """
    w2t = w2t_ref[...]
    b2 = b2_ref[...]
    w3 = w3_ref[...]
    b3 = b3_ref[0]

    def body(bb, carry):
        ub = ub_ref[bb]                                    # (E, tile_t)
        weff = weff_ref[bb]                                # (H1, E)
        qb = qb_ref[bb]                                    # (H1, 1) f32

        h1 = jnp.dot(weff, ub, preferred_element_type=jnp.float32) + qb
        h1 = jax.nn.sigmoid(h1)                            # (H1, tile_t) f32

        h2 = jnp.dot(w2t, h1.astype(w2t.dtype),
                     preferred_element_type=jnp.float32) + b2
        h2 = jax.nn.sigmoid(h2)                            # (H2, tile_t) f32

        score = jnp.dot(w3, h2.astype(w3.dtype),
                        preferred_element_type=jnp.float32) + b3   # (1, tile_t)
        out_ref[pl.ds(bb, 1), :] = score.astype(out_ref.dtype)
        return carry

    jax.lax.fori_loop(0, ub_ref.shape[0], body, 0)


def local_activation_unit(query, user_behavior, params, *,
                          tile_t=512, compute_dtype=None):
    """query: (B, 1, E), user_behavior: (B, T, E) -> attention scores (B, T, 1)."""
    B, one, E = query.shape
    assert one == 1
    Bu, T, E2 = user_behavior.shape
    assert Bu == B and E2 == E

    if compute_dtype is None:
        compute_dtype = _default_compute_dtype()

    w1, b1, w2, b2, w3, b3 = params
    assert w1.shape[0] == 4 * E
    H1, H2 = w1.shape[1], w2.shape[1]

    assert tile_t % 128 == 0, "tile_t must be a multiple of 128 (lane width)"
    if tile_t >= T:
        tile_t = T                      # single full-T block (any T allowed)
    num_tt = pl.cdiv(T, tile_t)         # ragged tail handled by Pallas masking

    # Fold the 4E-wide first layer (exact algebra, no in-kernel concatenate):
    #   [q, ub, q-ub, q*ub] @ W1 = ub @ (W1b - W1c + q*W1d) + q @ (W1a + W1c) + b1
    w1a, w1b, w1c, w1d = w1[:E], w1[E:2 * E], w1[2 * E:3 * E], w1[3 * E:]
    wq = w1a + w1c                      # (E, H1) query-only term
    wub = w1b - w1c                     # (E, H1)
    wqub = w1d                          # (E, H1)

    q2 = query[:, 0, :].astype(jnp.float32)                          # (B, E)
    # Per-row effective layer-1 weights, transposed: (B, H1, E).  Tiny (O(B)).
    weff_t = (wub.T[None, :, :]
              + wqub.T[None, :, :] * q2[:, None, :]).astype(compute_dtype)
    # Per-row layer-1 bias column (q @ Wq + b1): (B, H1, 1), kept f32.
    qb_col = (q2 @ wq + b1.reshape(1, H1))[:, :, None].astype(jnp.float32)

    # Dominant stream: feature-major relayout so T is the lane axis.
    ub_t = jnp.transpose(user_behavior, (0, 2, 1)).astype(compute_dtype)  # (B,E,T)

    w2t = w2.T.astype(compute_dtype)                    # (H2, H1)
    b2c = b2.reshape(H2, 1).astype(jnp.float32)         # (H2, 1)
    w3r = w3.reshape(1, H2).astype(compute_dtype)       # (1, H2)
    b3s = b3.reshape(1).astype(jnp.float32)             # SMEM scalar

    out = pl.pallas_call(
        _lau_kernel,
        out_shape=jax.ShapeDtypeStruct((B, T), jnp.float32),
        grid_spec=pltpu.PrefetchScalarGridSpec(
            num_scalar_prefetch=0,
            grid=(num_tt,),
            in_specs=[
                pl.BlockSpec((B, E, tile_t), lambda j: (0, 0, j)),   # ub (B,E,T)
                pl.BlockSpec((B, H1, E), lambda j: (0, 0, 0)),       # Weff^T
                pl.BlockSpec((B, H1, 1), lambda j: (0, 0, 0)),       # qb column
                pl.BlockSpec((H2, H1), lambda j: (0, 0)),            # W2^T
                pl.BlockSpec((H2, 1), lambda j: (0, 0)),             # b2 column
                pl.BlockSpec((1, H2), lambda j: (0, 0)),             # w3 row
                pl.BlockSpec(memory_space=pltpu.MemorySpace.SMEM),   # b3 scalar
            ],
            out_specs=pl.BlockSpec((B, tile_t), lambda j: (0, j)),
        ),
        compiler_params=pltpu.CompilerParams(
            dimension_semantics=("parallel",)),
    )(ub_t, weff_t, qb_col, w2t, b2c, w3r, b3s)

    return out[:, :, None]


def init_params(key, embedding_dim, hidden_units=(64, 32), init_std=1e-4):
    """Deterministic synthetic parameter init (mirrors init_mlp's small-std init)."""
    dims = [4 * embedding_dim] + list(hidden_units)
    keys = jax.random.split(key, len(dims))
    params = []
    for i in range(len(dims) - 1):
        w = jax.random.normal(keys[i], (dims[i], dims[i + 1]), jnp.float32) * init_std
        b = jnp.zeros((1, dims[i + 1]), jnp.float32)
        params += [w, b]
    w3 = jax.random.normal(keys[-1], (dims[-1], 1), jnp.float32) * init_std
    b3 = jnp.zeros((1, 1), jnp.float32)
    params += [w3, b3]
    return tuple(params)


def _reference(query, user_behavior, params):
    """Pure-JAX reference (unfolded weights and the explicit concat)."""
    w1, b1, w2, b2, w3, b3 = params
    B, _, E = query.shape
    T = user_behavior.shape[1]
    q = jnp.broadcast_to(query, (B, T, E))
    x = jnp.concatenate([q, user_behavior, q - user_behavior, q * user_behavior],
                        axis=-1)
    h1 = jax.nn.sigmoid(x @ w1 + b1)
    h2 = jax.nn.sigmoid(h1 @ w2 + b2)
    return h2 @ w3 + b3


if __name__ == "__main__":
    key = jax.random.PRNGKey(0)
    k_q, k_ub, k_p, k_q2, k_ub2 = jax.random.split(key, 5)

    # Module-default sizes (embedding_dim=4, hidden_units=(64, 32)).
    B, T, E = 2, 8, 4
    query = jax.random.normal(k_q, (B, 1, E), jnp.float32)
    user_behavior = jax.random.normal(k_ub, (B, T, E), jnp.float32)
    params = init_params(k_p, embedding_dim=E, hidden_units=(64, 32), init_std=0.05)

    # Case 1: tiny shapes, f32 compute (tight tolerance).
    out = jax.block_until_ready(
        local_activation_unit(query, user_behavior, params,
                              compute_dtype=jnp.float32))
    ref = _reference(query, user_behavior, params)
    assert out.shape == (B, T, 1)
    assert jnp.allclose(out, ref, atol=1e-4, rtol=1e-3), \
        float(jnp.max(jnp.abs(out - ref)))

    # Case 2: ragged T (boundary block) and multiple time tiles on the grid.
    B2, T2 = 4, 300
    query2 = jax.random.normal(k_q2, (B2, 1, E), jnp.float32)
    user_behavior2 = jax.random.normal(k_ub2, (B2, T2, E), jnp.float32)
    out2 = jax.block_until_ready(
        local_activation_unit(query2, user_behavior2, params,
                              tile_t=128, compute_dtype=jnp.float32))
    ref2 = _reference(query2, user_behavior2, params)
    assert out2.shape == (B2, T2, 1)
    assert jnp.allclose(out2, ref2, atol=1e-4, rtol=1e-3), \
        float(jnp.max(jnp.abs(out2 - ref2)))

    # Case 3: default compute dtype (bf16 on v6e/v7x, f32 otherwise) — loose tol.
    out3 = jax.block_until_ready(
        local_activation_unit(query2, user_behavior2, params))
    assert out3.shape == (B2, T2, 1)
    assert jnp.allclose(out3, ref2, atol=5e-2, rtol=1e-2), \
        float(jnp.max(jnp.abs(out3 - ref2)))

    print("KERNEL_OK")
</pallas_src>

<mosaic_0001>
module attributes {stable_mosaic.version = 11 : i64} {
  func.func @_lau_kernel(%arg0: i32, %arg1: memref<2x4x8xf32, #tpu.memory_space<vmem>>, %arg2: memref<2x64x4xf32, #tpu.memory_space<vmem>>, %arg3: memref<2x64x1xf32, #tpu.memory_space<vmem>>, %arg4: memref<32x64xf32, #tpu.memory_space<vmem>>, %arg5: memref<32x1xf32, #tpu.memory_space<vmem>>, %arg6: memref<1x32xf32, #tpu.memory_space<vmem>>, %arg7: memref<1xf32, #tpu.memory_space<smem>>, %arg8: memref<2x8xf32, #tpu.memory_space<vmem>>) attributes {dimension_semantics = [#tpu.dimension_semantics<parallel>], iteration_bounds = array<i64: 1>, scalar_prefetch = 0 : i64, scratch_operands = 0 : i64, tpu.core_type = #tpu.core_type<tc>, window_params = [{transform_indices = @transform_0, window_bounds = array<i64: 2, 4, 8>}, {pipeline_mode = #tpu.pipeline_mode<synchronous>, transform_indices = @transform_1, window_bounds = array<i64: 2, 64, 4>}, {pipeline_mode = #tpu.pipeline_mode<synchronous>, transform_indices = @transform_2, window_bounds = array<i64: 2, 64, 1>}, {pipeline_mode = #tpu.pipeline_mode<synchronous>, transform_indices = @transform_3, window_bounds = array<i64: 32, 64>}, {pipeline_mode = #tpu.pipeline_mode<synchronous>, transform_indices = @transform_4, window_bounds = array<i64: 32, 1>}, {pipeline_mode = #tpu.pipeline_mode<synchronous>, transform_indices = @transform_5, window_bounds = array<i64: 1, 32>}, {transform_indices = @transform_6, window_bounds = array<i64: 1>}, {transform_indices = @transform_7, window_bounds = array<i64: 2, 8>}]} {
    %c0 = arith.constant 0 : index
    %c0_0 = arith.constant 0 : index
    %0 = vector.load %arg4[%c0, %c0_0] : memref<32x64xf32, #tpu.memory_space<vmem>>, vector<32x64xf32>
    %c0_1 = arith.constant 0 : index
    %c0_2 = arith.constant 0 : index
    %1 = vector.load %arg5[%c0_1, %c0_2] : memref<32x1xf32, #tpu.memory_space<vmem>>, vector<32x1xf32>
    %c0_3 = arith.constant 0 : index
    %c0_4 = arith.constant 0 : index
    %2 = vector.load %arg6[%c0_3, %c0_4] : memref<1x32xf32, #tpu.memory_space<vmem>>, vector<1x32xf32>
    %c0_5 = arith.constant 0 : index
    %3 = memref.load %arg7[%c0_5] : memref<1xf32, #tpu.memory_space<smem>>
    %c0_i32 = arith.constant 0 : i32
    %c2_i32 = arith.constant 2 : i32
    %4 = arith.addi %c0_i32, %c2_i32 : i32
    %c1_i32 = arith.constant 1 : i32
    scf.for %arg9 = %c0_i32 to %4 step %c1_i32  : i32 {
      %5 = arith.index_cast %arg9 : i32 to index
      %c0_7 = arith.constant 0 : index
      %c0_8 = arith.constant 0 : index
      %6 = vector.load %arg1[%5, %c0_7, %c0_8] : memref<2x4x8xf32, #tpu.memory_space<vmem>>, vector<1x4x8xf32>
      %7 = vector.shape_cast %6 : vector<1x4x8xf32> to vector<4x8xf32>
      %8 = arith.index_cast %arg9 : i32 to index
      %c0_9 = arith.constant 0 : index
      %c0_10 = arith.constant 0 : index
      %9 = vector.load %arg2[%8, %c0_9, %c0_10] : memref<2x64x4xf32, #tpu.memory_space<vmem>>, vector<1x64x4xf32>
      %10 = vector.shape_cast %9 : vector<1x64x4xf32> to vector<64x4xf32>
      %11 = arith.index_cast %arg9 : i32 to index
      %c0_11 = arith.constant 0 : index
      %c0_12 = arith.constant 0 : index
      %12 = vector.load %arg3[%11, %c0_11, %c0_12] : memref<2x64x1xf32, #tpu.memory_space<vmem>>, vector<1x64x1xf32>
      %13 = vector.shape_cast %12 : vector<1x64x1xf32> to vector<64x1xf32>
      %cst = arith.constant dense<0.000000e+00> : vector<64x8xf32>
      %14 = tpu.matmul %10, %7, %cst {dimension_numbers = #tpu.dot_dimension_numbers<[1], [0], [0], [1], [0, 0, 1, 1], [], []>} : vector<64x4xf32>, vector<4x8xf32>, vector<64x8xf32> -> vector<64x8xf32>
      %15 = vector.broadcast %13 : vector<64x1xf32> to vector<64x8xf32>
      %16 = arith.addf %14, %15 : vector<64x8xf32>
      %17 = arith.negf %16 : vector<64x8xf32>
      %18 = math.exp %17 : vector<64x8xf32>
      %cst_13 = arith.constant 1.000000e+00 : f32
      %19 = vector.broadcast %cst_13 : f32 to vector<64x8xf32>
      %20 = arith.addf %19, %18 : vector<64x8xf32>
      %21 = arith.divf %19, %20 : vector<64x8xf32>
      %cst_14 = arith.constant dense<0.000000e+00> : vector<32x8xf32>
      %22 = tpu.matmul %0, %21, %cst_14 {dimension_numbers = #tpu.dot_dimension_numbers<[1], [0], [0], [1], [0, 0, 1, 1], [], []>} : vector<32x64xf32>, vector<64x8xf32>, vector<32x8xf32> -> vector<32x8xf32>
      %23 = vector.broadcast %1 : vector<32x1xf32> to vector<32x8xf32>
      %24 = arith.addf %22, %23 : vector<32x8xf32>
      %25 = arith.negf %24 : vector<32x8xf32>
      %26 = math.exp %25 : vector<32x8xf32>
      %cst_15 = arith.constant 1.000000e+00 : f32
      %27 = vector.broadcast %cst_15 : f32 to vector<32x8xf32>
      %28 = arith.addf %27, %26 : vector<32x8xf32>
      %29 = arith.divf %27, %28 : vector<32x8xf32>
      %cst_16 = arith.constant dense<0.000000e+00> : vector<1x8xf32>
      %30 = tpu.matmul %2, %29, %cst_16 {dimension_numbers = #tpu.dot_dimension_numbers<[1], [0], [0], [1], [0, 0, 1, 1], [], []>} : vector<1x32xf32>, vector<32x8xf32>, vector<1x8xf32> -> vector<1x8xf32>
      %31 = vector.broadcast %3 : f32 to vector<1x8xf32>
      %32 = arith.addf %30, %31 : vector<1x8xf32>
      %33 = arith.index_cast %arg9 : i32 to index
      %c0_17 = arith.constant 0 : index
      %34 = vector.load %arg8[%33, %c0_17] : memref<2x8xf32, #tpu.memory_space<vmem>>, vector<1x8xf32>
      tpu.vector_store %arg8[%33, %c0_17], %32 {strides = array<i32>} : memref<2x8xf32, #tpu.memory_space<vmem>>, vector<1x8xf32>,
    }
    %c2_i32_6 = arith.constant 2 : i32
    return
  }
  func.func @transform_0(%arg0: i32) -> (i32, i32, i32) {
    %c0_i32 = arith.constant 0 : i32
    %c0_i32_0 = arith.constant 0 : i32
    %c0_i32_1 = arith.constant 0 : i32
    return %c0_i32, %c0_i32_0, %arg0 : i32, i32, i32
  }
  func.func @transform_1(%arg0: i32) -> (i32, i32, i32) {
    %c0_i32 = arith.constant 0 : i32
    %c0_i32_0 = arith.constant 0 : i32
    %c0_i32_1 = arith.constant 0 : i32
    %c0_i32_2 = arith.constant 0 : i32
    return %c0_i32, %c0_i32_0, %c0_i32_1 : i32, i32, i32
  }
  func.func @transform_2(%arg0: i32) -> (i32, i32, i32) {
    %c0_i32 = arith.constant 0 : i32
    %c0_i32_0 = arith.constant 0 : i32
    %c0_i32_1 = arith.constant 0 : i32
    %c0_i32_2 = arith.constant 0 : i32
    return %c0_i32, %c0_i32_0, %c0_i32_1 : i32, i32, i32
  }
  func.func @transform_3(%arg0: i32) -> (i32, i32) {
    %c0_i32 = arith.constant 0 : i32
    %c0_i32_0 = arith.constant 0 : i32
    %c0_i32_1 = arith.constant 0 : i32
    return %c0_i32, %c0_i32_0 : i32, i32
  }
  func.func @transform_4(%arg0: i32) -> (i32, i32) {
    %c0_i32 = arith.constant 0 : i32
    %c0_i32_0 = arith.constant 0 : i32
    %c0_i32_1 = arith.constant 0 : i32
    return %c0_i32, %c0_i32_0 : i32, i32
  }
  func.func @transform_5(%arg0: i32) -> (i32, i32) {
    %c0_i32 = arith.constant 0 : i32
    %c0_i32_0 = arith.constant 0 : i32
    %c0_i32_1 = arith.constant 0 : i32
    return %c0_i32, %c0_i32_0 : i32, i32
  }
  func.func @transform_6(%arg0: i32) -> i32 {
    %c0_i32 = arith.constant 0 : i32
    %c0_i32_0 = arith.constant 0 : i32
    return %c0_i32 : i32
  }
  func.func @transform_7(%arg0: i32) -> (i32, i32) {
    %c0_i32 = arith.constant 0 : i32
    %c0_i32_0 = arith.constant 0 : i32
    return %c0_i32, %arg0 : i32, i32
  }
}

</mosaic_0001>

<llo_original>
// kernel: tpu_custom_call.1
$region0: #{tpu_custom_call.1}
  #allocation0 [shape = 'u32[]', space=smem, size = 0x4, offset = 0x4, fixed_abs, tag = 'smem constant byte address 0x4 - core index']
  #allocation1 [shape = 'u32[144,128]{1,0:T(1,128)}', space=vmem, size = 0x12000, scoped, tag = 'internal scratch']
  #allocation2 [shape = 'f32[1]{0:T(128)S(6)}', space=smem, size = 0x200, scoped, tag = 'scoped memory for tpu_custom_call.1']
  %s0 = inlined_call_operand.vmem [shape: f32[2,4,8], index: 0, kind: input, shape index: {}]
  %s1 = inlined_call_operand.vmem [shape: f32[2,64,4], index: 1, kind: input, shape index: {}]
  %s2 = inlined_call_operand.vmem [shape: f32[2,64,1], index: 2, kind: input, shape index: {}]
  %s3 = inlined_call_operand.vmem [shape: f32[32,64], index: 3, kind: input, shape index: {}]
  %s4 = inlined_call_operand.vmem [shape: f32[32,1], index: 4, kind: input, shape index: {}]
  %s5 = inlined_call_operand.vmem [shape: f32[1,32], index: 5, kind: input, shape index: {}]
  %s6 = inlined_call_operand.<no memory space> [shape: f32[1], index: 6, kind: input, shape index: {}]
  %s7 = inlined_call_operand.hbm [shape: f32[2,8], index: 7, kind: output, shape index: {}]
  %s8 = sld [smem:[#allocation0]]
  $region45: #{tpu_custom_call.1} parent=0
    _
  %s10 = ssub.s32 1, %s8
  %s11 = scalar_select 0, %s10, %s8
  %12 = sst [smem:[#allocation2]] %s6
  $region1: #{tpu_custom_call.1} parent=0
    #allocation3 [shape = 'u8[1024]{0}', space=vmem, size = 0x400, scoped, tag = 'output window, operand 0, single buffered']
    #allocation4 [shape = 's32[1]{0}', space=sflag, size = 0x4, scoped, tag = 'scoped memory for tpu_custom_call.1']
    %13 = vsyncpa [#allocation4], 0
    // Predicated region
    $region2: #{tpu_custom_call.1} parent=1 // pred_check
      _
    $region3: #{tpu_custom_call.1} parent=1 // pred_check_branch
      %15 = sbr.rel (0) target = $region5
    $region4: #{tpu_custom_call.1} parent=1 // pred_region
      _
    $region5: #{tpu_custom_call.1} parent=1 // pred_fallthru
      _
    // Predicated region
    $region6: #{tpu_custom_call.1} parent=1 // pred_check
      _
    $region7: #{tpu_custom_call.1} parent=1 // pred_check_branch
      %17 = sbr.rel (0) target = $region9
    $region8: #{tpu_custom_call.1} parent=1 // pred_region
      _
    $region9: #{tpu_custom_call.1} parent=1 // pred_fallthru
      _
    // Predicated region
    $region10: #{tpu_custom_call.1} parent=1 // pred_check
      _
    $region11: #{tpu_custom_call.1} parent=1 // pred_check_branch
      %19 = sbr.rel (0) target = $region13
    $region12: #{tpu_custom_call.1} parent=1 // pred_region
      _
    $region13: #{tpu_custom_call.1} parent=1 // pred_fallthru
      _
    // Predicated region
    $region14: #{tpu_custom_call.1} parent=1 // pred_check
      _
    $region15: #{tpu_custom_call.1} parent=1 // pred_check_branch
      %21 = sbr.rel (0) target = $region17
    $region16: #{tpu_custom_call.1} parent=1 // pred_region
      _
    $region17: #{tpu_custom_call.1} parent=1 // pred_fallthru
      _
    // Predicated region
    $region18: #{tpu_custom_call.1} parent=1 // pred_check
      _
    $region19: #{tpu_custom_call.1} parent=1 // pred_check_branch
      %23 = sbr.rel (0) target = $region21
    $region20: #{tpu_custom_call.1} parent=1 // pred_region
      _
    $region21: #{tpu_custom_call.1} parent=1 // pred_fallthru
      _
    // Predicated region
    $region22: #{tpu_custom_call.1} parent=1 // pred_check
      _
    $region23: #{tpu_custom_call.1} parent=1 // pred_check_branch
      %25 = sbr.rel (0) target = $region25
    $region24: #{tpu_custom_call.1} parent=1 // pred_region
      _
    $region25: #{tpu_custom_call.1} parent=1 // pred_fallthru
      _
    // Predicated region
    $region26: #{tpu_custom_call.1} parent=1 // pred_check
      _
    $region27: #{tpu_custom_call.1} parent=1 // pred_check_branch
      %27 = sbr.rel (0) target = $region29
    $region28: #{tpu_custom_call.1} parent=1 // pred_region
      _
    $region29: #{tpu_custom_call.1} parent=1 // pred_fallthru
      _
    %v28 = vld [vmem:[%s3] sm:$0xff]
    %v29 = vld [vmem:[%s3 + $0x8] sm:$0xff]
    %v30 = vld [vmem:[%s3 + $0x10] sm:$0xff]
    %v31 = vld [vmem:[%s3 + $0x18] sm:$0xff]
    %v32 = vld [vmem:[%s4] sm:$0xff]
    %v33 = vld [vmem:[%s4 + $0x8] sm:$0xff]
    %v34 = vld [vmem:[%s4 + $0x10] sm:$0xff]
    %v35 = vld [vmem:[%s4 + $0x18] sm:$0xff]
    %v36 = vld [vmem:[%s5] sm:$0x1]
    %s37 = sld [smem:[#allocation2]]
    loop: start=0, step=1, limit=2
    $region30: #{tpu_custom_call.1} parent=1 // loop_pre_header
      _
    $region31: #{tpu_custom_call.1} parent=1 // loop_header
      %s39 = sphi 0, %s43
      %p40 = scmp.ge.s32.totalorder %s39, 2
    $region32: #{tpu_custom_call.1} parent=1 // loop_header_branch
      %42 = sbr.rel (%p40) target = $region36
    $region33: #{tpu_custom_call.1} parent=1 // loop_body
      %s44 = smul.u32 %s39, 4
      %s45 = scalar_lea.vmem %s0, %s44
      %v46 = vld [vmem:[%s45] sm:$0xf]
      %s47 = smul.u32 %s39, 64
      %s48 = scalar_lea.vmem %s1, %s47
      %v49 = vld [vmem:[%s48] sm:$0xff]
      %v50 = vld [vmem:[%s48 + $0x8] sm:$0xff]
      %v51 = vld [vmem:[%s48 + $0x10] sm:$0xff]
      %v52 = vld [vmem:[%s48 + $0x18] sm:$0xff]
      %v53 = vld [vmem:[%s48 + $0x20] sm:$0xff]
      %v54 = vld [vmem:[%s48 + $0x28] sm:$0xff]
      %v55 = vld [vmem:[%s48 + $0x30] sm:$0xff]
      %v56 = vld [vmem:[%s48 + $0x38] sm:$0xff]
      %s57 = scalar_lea.vmem %s2, %s47
      %v58 = vld [vmem:[%s57] sm:$0xff]
      %v59 = vld [vmem:[%s57 + $0x8] sm:$0xff]
      %v60 = vld [vmem:[%s57 + $0x10] sm:$0xff]
      %v61 = vld [vmem:[%s57 + $0x18] sm:$0xff]
      %v62 = vld [vmem:[%s57 + $0x20] sm:$0xff]
      %v63 = vld [vmem:[%s57 + $0x28] sm:$0xff]
      %v64 = vld [vmem:[%s57 + $0x30] sm:$0xff]
      %v65 = vld [vmem:[%s57 + $0x38] sm:$0xff]
      %67 = vset.pattern.permute.xlu0 0
      %68 = vperm.xlu0 %67, %v58
      %v69 = vpop.permute.xlu0 %68
      %72 = vset.pattern.permute.xlu0 0
      %73 = vperm.xlu0 %72, %v59
      %v74 = vpop.permute.xlu0 %73
      %77 = vset.pattern.permute.xlu0 0
      %78 = vperm.xlu0 %77, %v60
      %v79 = vpop.permute.xlu0 %78
      %82 = vset.pattern.permute.xlu0 0
      %83 = vperm.xlu0 %82, %v61
      %v84 = vpop.permute.xlu0 %83
      %87 = vset.pattern.permute.xlu0 0
      %88 = vperm.xlu0 %87, %v62
      %v89 = vpop.permute.xlu0 %88
      %92 = vset.pattern.permute.xlu0 0
      %93 = vperm.xlu0 %92, %v63
      %v94 = vpop.permute.xlu0 %93
      %97 = vset.pattern.permute.xlu0 0
      %98 = vperm.xlu0 %97, %v64
      %v99 = vpop.permute.xlu0 %98
      %102 = vset.pattern.permute.xlu0 0
      %103 = vperm.xlu0 %102, %v65
      %v104 = vpop.permute.xlu0 %103
      %vm106 = vcmask 31744
      %v108 = vsel %vm106, %v49, 0
      %v111 = vsel %vm106, %v50, 0
      %v114 = vsel %vm106, %v51, 0
      %v117 = vsel %vm106, %v52, 0
      %v120 = vsel %vm106, %v53, 0
      %v123 = vsel %vm106, %v54, 0
      %v126 = vsel %vm106, %v55, 0
      %v129 = vsel %vm106, %v56, 0
      %vm131 = vcmask 1043456
      %v133 = vsel %vm131, %v46, 0
      %135 = vmatprep.subr.mxu0 0.0
      %136 = vmatpush1.msra.mxu0 %v133
      %137 = vmatprep.subr.mxu0 0.0
      %138 = vmatpush1.msra.mxu0 0.0
      %139 = vmatprep.subr.mxu0 0.0
      %140 = vmatpush1.msra.mxu0 0.0
      %141 = vmatprep.subr.mxu0 0.0
      %142 = vmatpush1.msra.mxu0 0.0
      %143 = vmatprep.subr.mxu0 0.0
      %144 = vmatpush1.msra.mxu0 0.0
      %145 = vmatprep.subr.mxu0 0.0
      %146 = vmatpush1.msra.mxu0 0.0
      %147 = vmatprep.subr.mxu0 0.0
      %148 = vmatpush1.msra.mxu0 0.0
      %149 = vmatprep.subr.mxu0 0.0
      %150 = vmatpush1.msra.mxu0 0.0
      %151 = vmatprep.subr.mxu0 0.0
      %152 = vmatpush1.msra.mxu0 0.0
      %153 = vmatprep.subr.mxu0 0.0
      %154 = vmatpush1.msra.mxu0 0.0
      %155 = vmatprep.subr.mxu0 0.0
      %156 = vmatpush1.msra.mxu0 0.0
      %157 = vmatprep.subr.mxu0 0.0
      %158 = vmatpush1.msra.mxu0 0.0
      %159 = vmatprep.subr.mxu0 0.0
      %160 = vmatpush1.msra.mxu0 0.0
      %161 = vmatprep.subr.mxu0 0.0
      %162 = vmatpush1.msra.mxu0 0.0
      %163 = vmatprep.subr.mxu0 0.0
      %164 = vmatpush1.msra.mxu0 0.0
      %165 = vmatprep.subr.mxu0 0.0
      %166 = vmatpush1.msra.mxu0 0.0
      %167 = vmatprep.subr.mxu0 0.0
      %168 = vmatpush1.msra.mxu0 0.0
      %169 = vmatprep.subr.mxu0 0.0
      %170 = vmatpush1.msra.mxu0 0.0
      %171 = vmatprep.subr.mxu0 0.0
      %172 = vmatpush1.msra.mxu0 0.0
      %173 = vmatprep.subr.mxu0 0.0
      %174 = vmatpush1.msra.mxu0 0.0
      %175 = vmatprep.subr.mxu0 0.0
      %176 = vmatpush1.msra.mxu0 0.0
      %177 = vmatprep.subr.mxu0 0.0
      %178 = vmatpush1.msra.mxu0 0.0
      %179 = vmatprep.subr.mxu0 0.0
      %180 = vmatpush1.msra.mxu0 0.0
      %181 = vmatprep.subr.mxu0 0.0
      %182 = vmatpush1.msra.mxu0 0.0
      %183 = vmatprep.subr.mxu0 0.0
      %184 = vmatpush1.msra.mxu0 0.0
      %185 = vmatprep.subr.mxu0 0.0
      %186 = vmatpush1.msra.mxu0 0.0
      %187 = vmatprep.subr.mxu0 0.0
      %188 = vmatpush1.msra.mxu0 0.0
      %189 = vmatprep.subr.mxu0 0.0
      %190 = vmatpush1.msra.mxu0 0.0
      %191 = vmatprep.subr.mxu0 0.0
      %192 = vmatpush1.msra.mxu0 0.0
      %193 = vmatprep.subr.mxu0 0.0
      %194 = vmatpush1.msra.mxu0 0.0
      %195 = vmatprep.subr.mxu0 0.0
      %196 = vmatpush1.msra.mxu0 0.0
      %197 = vmatprep.subr.mxu0 0.0
      %198 = vmatpush1.msra.mxu0 0.0
      %199 = vmatprep.mubr.f32.mxu0 0.0
      %200 = vmatmul.mubr.f32.gmra.mrb[0].mxu0 %v108
      %v201 = vpop.f32.mrb[0].mxu0
      %v202 = vadd.f32 %v69, %v201
      %v203 = vpop.f32.mrb[0].mxu0
      %204 = vmatprep.mubr.f32.mxu0 0.0
      %205 = vmatmul.mubr.f32.gmra.mrb[0].mxu0 %v111
      %v206 = vpop.f32.mrb[0].mxu0
      %v207 = vadd.f32 %v74, %v206
      %v208 = vpop.f32.mrb[0].mxu0
      %209 = vmatprep.mubr.f32.mxu0 0.0
      %210 = vmatmul.mubr.f32.gmra.mrb[0].mxu0 %v114
      %v211 = vpop.f32.mrb[0].mxu0
      %v212 = vadd.f32 %v79, %v211
      %v213 = vpop.f32.mrb[0].mxu0
      %214 = vmatprep.mubr.f32.mxu0 0.0
      %215 = vmatmul.mubr.f32.gmra.mrb[0].mxu0 %v117
      %v216 = vpop.f32.mrb[0].mxu0
      %v217 = vadd.f32 %v84, %v216
      %v218 = vpop.f32.mrb[0].mxu0
      %219 = vmatprep.mubr.f32.mxu0 0.0
      %220 = vmatmul.mubr.f32.gmra.mrb[0].mxu0 %v120
      %v221 = vpop.f32.mrb[0].mxu0
      %v222 = vadd.f32 %v89, %v221
      %v223 = vpop.f32.mrb[0].mxu0
      %224 = vmatprep.mubr.f32.mxu0 0.0
      %225 = vmatmul.mubr.f32.gmra.mrb[0].mxu0 %v123
      %v226 = vpop.f32.mrb[0].mxu0
      %v227 = vadd.f32 %v94, %v226
      %v228 = vpop.f32.mrb[0].mxu0
      %229 = vmatprep.mubr.f32.mxu0 0.0
      %230 = vmatmul.mubr.f32.gmra.mrb[0].mxu0 %v126
      %v231 = vpop.f32.mrb[0].mxu0
      %v232 = vadd.f32 %v99, %v231
      %v233 = vpop.f32.mrb[0].mxu0
      %234 = vmatprep.mubr.f32.mxu0 0.0
      %235 = vmatmul.mubr.f32.gmra.mrb[0].mxu0 %v129
      %v236 = vpop.f32.mrb[0].mxu0
      %v237 = vadd.f32 %v104, %v236
      %v238 = vpop.f32.mrb[0].mxu0
      %239 = vdwg.mxu0
      %v240 = vxor.u32 %v202, 2147483648
      %v241 = vxor.u32 %v207, 2147483648
      %v242 = vxor.u32 %v212, 2147483648
      %v243 = vxor.u32 %v217, 2147483648
      %v244 = vxor.u32 %v222, 2147483648
      %v245 = vxor.u32 %v227, 2147483648
      %v246 = vxor.u32 %v232, 2147483648
      %v247 = vxor.u32 %v237, 2147483648
      %v248 = vmul.f32 %v240, 1.442695
      %v249 = vpow.pop %v248
      %v250 = vmul.f32 %v241, 1.442695
      %v251 = vpow.pop %v250
      %v252 = vmul.f32 %v242, 1.442695
      %v253 = vpow.pop %v252
      %v254 = vmul.f32 %v243, 1.442695
      %v255 = vpow.pop %v254
      %v256 = vmul.f32 %v244, 1.442695
      %v257 = vpow.pop %v256
      %v258 = vmul.f32 %v245, 1.442695
      %v259 = vpow.pop %v258
      %v260 = vmul.f32 %v246, 1.442695
      %v261 = vpow.pop %v260
      %v262 = vmul.f32 %v247, 1.442695
      %v263 = vpow.pop %v262
      %v264 = vadd.f32 %v249, 1.0
      %v265 = vadd.f32 %v251, 1.0
      %v266 = vadd.f32 %v253, 1.0
      %v267 = vadd.f32 %v255, 1.0
      %v268 = vadd.f32 %v257, 1.0
      %v269 = vadd.f32 %v259, 1.0
      %v270 = vadd.f32 %v261, 1.0
      %v271 = vadd.f32 %v263, 1.0
      %v272 = vrcp.pop %v264
      %v273 = vmul.f32 1.0, %v272
      %v274 = vrcp.pop %v265
      %v275 = vmul.f32 1.0, %v274
      %v276 = vrcp.pop %v266
      %v277 = vmul.f32 1.0, %v276
      %v278 = vrcp.pop %v267
      %v279 = vmul.f32 1.0, %v278
      %v280 = vrcp.pop %v268
      %v281 = vmul.f32 1.0, %v280
      %v282 = vrcp.pop %v269
      %v283 = vmul.f32 1.0, %v282
      %v284 = vrcp.pop %v270
      %v285 = vmul.f32 1.0, %v284
      %v286 = vrcp.pop %v271
      %v287 = vmul.f32 1.0, %v286
      %289 = vset.pattern.permute.xlu0 0
      %290 = vperm.xlu0 %289, %v32
      %v291 = vpop.permute.xlu0 %290
      %294 = vset.pattern.permute.xlu0 0
      %295 = vperm.xlu0 %294, %v33
      %v296 = vpop.permute.xlu0 %295
      %299 = vset.pattern.permute.xlu0 0
      %300 = vperm.xlu0 %299, %v34
      %v301 = vpop.permute.xlu0 %300
      %304 = vset.pattern.permute.xlu0 0
      %305 = vperm.xlu0 %304, %v35
      %v306 = vpop.permute.xlu0 %305
      %vm308 = vcmask 523264
      %v310 = vsel %vm308, %v28, 0
      %v313 = vsel %vm308, %v29, 0
      %v316 = vsel %vm308, %v30, 0
      %v319 = vsel %vm308, %v31, 0
      %321 = vmatprep.subr.mxu0 0.0
      %322 = vmatpush1.msra.mxu0 %v273
      %323 = vmatprep.subr.mxu0 0.0
      %324 = vmatpush1.msra.mxu0 %v275
      %325 = vmatprep.subr.mxu0 0.0
      %326 = vmatpush1.msra.mxu0 %v277
      %327 = vmatprep.subr.mxu0 0.0
      %328 = vmatpush1.msra.mxu0 %v279
      %329 = vmatprep.subr.mxu0 0.0
      %330 = vmatpush1.msra.mxu0 %v281
      %331 = vmatprep.subr.mxu0 0.0
      %332 = vmatpush1.msra.mxu0 %v283
      %333 = vmatprep.subr.mxu0 0.0
      %334 = vmatpush1.msra.mxu0 %v285
      %335 = vmatprep.subr.mxu0 0.0
      %336 = vmatpush1.msra.mxu0 %v287
      %337 = vmatprep.subr.mxu0 0.0
      %338 = vmatpush1.msra.mxu0 0.0
      %339 = vmatprep.subr.mxu0 0.0
      %340 = vmatpush1.msra.mxu0 0.0
      %341 = vmatprep.subr.mxu0 0.0
      %342 = vmatpush1.msra.mxu0 0.0
      %343 = vmatprep.subr.mxu0 0.0
      %344 = vmatpush1.msra.mxu0 0.0
      %345 = vmatprep.subr.mxu0 0.0
      %346 = vmatpush1.msra.mxu0 0.0
      %347 = vmatprep.subr.mxu0 0.0
      %348 = vmatpush1.msra.mxu0 0.0
      %349 = vmatprep.subr.mxu0 0.0
      %350 = vmatpush1.msra.mxu0 0.0
      %351 = vmatprep.subr.mxu0 0.0
      %352 = vmatpush1.msra.mxu0 0.0
      %353 = vmatprep.subr.mxu0 0.0
      %354 = vmatpush1.msra.mxu0 0.0
      %355 = vmatprep.subr.mxu0 0.0
      %356 = vmatpush1.msra.mxu0 0.0
      %357 = vmatprep.subr.mxu0 0.0
      %358 = vmatpush1.msra.mxu0 0.0
      %359 = vmatprep.subr.mxu0 0.0
      %360 = vmatpush1.msra.mxu0 0.0
      %361 = vmatprep.subr.mxu0 0.0
      %362 = vmatpush1.msra.mxu0 0.0
      %363 = vmatprep.subr.mxu0 0.0
      %364 = vmatpush1.msra.mxu0 0.0
      %365 = vmatprep.subr.mxu0 0.0
      %366 = vmatpush1.msra.mxu0 0.0
      %367 = vmatprep.subr.mxu0 0.0
      %368 = vmatpush1.msra.mxu0 0.0
      %369 = vmatprep.subr.mxu0 0.0
      %370 = vmatpush1.msra.mxu0 0.0
      %371 = vmatprep.subr.mxu0 0.0
      %372 = vmatpush1.msra.mxu0 0.0
      %373 = vmatprep.subr.mxu0 0.0
      %374 = vmatpush1.msra.mxu0 0.0
      %375 = vmatprep.subr.mxu0 0.0
      %376 = vmatpush1.msra.mxu0 0.0
      %377 = vmatprep.subr.mxu0 0.0
      %378 = vmatpush1.msra.mxu0 0.0
      %379 = vmatprep.subr.mxu0 0.0
      %380 = vmatpush1.msra.mxu0 0.0
      %381 = vmatprep.subr.mxu0 0.0
      %382 = vmatpush1.msra.mxu0 0.0
      %383 = vmatprep.subr.mxu0 0.0
      %384 = vmatpush1.msra.mxu0 0.0
      %385 = vmatprep.mubr.f32.mxu0 0.0
      %386 = vmatmul.mubr.f32.gmra.mrb[0].mxu0 %v310
      %v387 = vpop.f32.mrb[0].mxu0
      %v388 = vadd.f32 %v291, %v387
      %v389 = vpop.f32.mrb[0].mxu0
      %390 = vmatprep.mubr.f32.mxu0 0.0
      %391 = vmatmul.mubr.f32.gmra.mrb[0].mxu0 %v313
      %v392 = vpop.f32.mrb[0].mxu0
      %v393 = vadd.f32 %v296, %v392
      %v394 = vpop.f32.mrb[0].mxu0
      %395 = vmatprep.mubr.f32.mxu0 0.0
      %396 = vmatmul.mubr.f32.gmra.mrb[0].mxu0 %v316
      %v397 = vpop.f32.mrb[0].mxu0
      %v398 = vadd.f32 %v301, %v397
      %v399 = vpop.f32.mrb[0].mxu0
      %400 = vmatprep.mubr.f32.mxu0 0.0
      %401 = vmatmul.mubr.f32.gmra.mrb[0].mxu0 %v319
      %v402 = vpop.f32.mrb[0].mxu0
      %v403 = vadd.f32 %v306, %v402
      %v404 = vpop.f32.mrb[0].mxu0
      %405 = vdwg.mxu0
      %v406 = vxor.u32 %v388, 2147483648
      %v407 = vxor.u32 %v393, 2147483648
      %v408 = vxor.u32 %v398, 2147483648
      %v409 = vxor.u32 %v403, 2147483648
      %v410 = vmul.f32 %v406, 1.442695
      %v411 = vpow.pop %v410
      %v412 = vmul.f32 %v407, 1.442695
      %v413 = vpow.pop %v412
      %v414 = vmul.f32 %v408, 1.442695
      %v415 = vpow.pop %v414
      %v416 = vmul.f32 %v409, 1.442695
      %v417 = vpow.pop %v416
      %v418 = vadd.f32 %v411, 1.0
      %v419 = vadd.f32 %v413, 1.0
      %v420 = vadd.f32 %v415, 1.0
      %v421 = vadd.f32 %v417, 1.0
      %v422 = vrcp.pop %v418
      %v423 = vmul.f32 1.0, %v422
      %v424 = vrcp.pop %v419
      %v425 = vmul.f32 1.0, %v424
      %v426 = vrcp.pop %v420
      %v427 = vmul.f32 1.0, %v426
      %v428 = vrcp.pop %v421
      %v429 = vmul.f32 1.0, %v428
      %v430 = vstv %s37
      %vm431 = vcmask 261120
      %v433 = vsel %vm431, %v36, 0
      %435 = vmatprep.subr.mxu0 0.0
      %436 = vmatpush1.msra.mxu0 %v423
      %437 = vmatprep.subr.mxu0 0.0
      %438 = vmatpush1.msra.mxu0 %v425
      %439 = vmatprep.subr.mxu0 0.0
      %440 = vmatpush1.msra.mxu0 %v427
      %441 = vmatprep.subr.mxu0 0.0
      %442 = vmatpush1.msra.mxu0 %v429
      %443 = vmatprep.subr.mxu0 0.0
      %444 = vmatpush1.msra.mxu0 0.0
      %445 = vmatprep.subr.mxu0 0.0
      %446 = vmatpush1.msra.mxu0 0.0
      %447 = vmatprep.subr.mxu0 0.0
      %448 = vmatpush1.msra.mxu0 0.0
      %449 = vmatprep.subr.mxu0 0.0
      %450 = vmatpush1.msra.mxu0 0.0
      %451 = vmatprep.subr.mxu0 0.0
      %452 = vmatpush1.msra.mxu0 0.0
      %453 = vmatprep.subr.mxu0 0.0
      %454 = vmatpush1.msra.mxu0 0.0
      %455 = vmatprep.subr.mxu0 0.0
      %456 = vmatpush1.msra.mxu0 0.0
      %457 = vmatprep.subr.mxu0 0.0
      %458 = vmatpush1.msra.mxu0 0.0
      %459 = vmatprep.subr.mxu0 0.0
      %460 = vmatpush1.msra.mxu0 0.0
      %461 = vmatprep.subr.mxu0 0.0
      %462 = vmatpush1.msra.mxu0 0.0
      %463 = vmatprep.subr.mxu0 0.0
      %464 = vmatpush1.msra.mxu0 0.0
      %465 = vmatprep.subr.mxu0 0.0
      %466 = vmatpush1.msra.mxu0 0.0
      %467 = vmatprep.subr.mxu0 0.0
      %468 = vmatpush1.msra.mxu0 0.0
      %469 = vmatprep.subr.mxu0 0.0
      %470 = vmatpush1.msra.mxu0 0.0
      %471 = vmatprep.subr.mxu0 0.0
      %472 = vmatpush1.msra.mxu0 0.0
      %473 = vmatprep.subr.mxu0 0.0
      %474 = vmatpush1.msra.mxu0 0.0
      %475 = vmatprep.subr.mxu0 0.0
      %476 = vmatpush1.msra.mxu0 0.0
      %477 = vmatprep.subr.mxu0 0.0
      %478 = vmatpush1.msra.mxu0 0.0
      %479 = vmatprep.subr.mxu0 0.0
      %480 = vmatpush1.msra.mxu0 0.0
      %481 = vmatprep.subr.mxu0 0.0
      %482 = vmatpush1.msra.mxu0 0.0
      %483 = vmatprep.subr.mxu0 0.0
      %484 = vmatpush1.msra.mxu0 0.0
      %485 = vmatprep.subr.mxu0 0.0
      %486 = vmatpush1.msra.mxu0 0.0
      %487 = vmatprep.subr.mxu0 0.0
      %488 = vmatpush1.msra.mxu0 0.0
      %489 = vmatprep.subr.mxu0 0.0
      %490 = vmatpush1.msra.mxu0 0.0
      %491 = vmatprep.subr.mxu0 0.0
      %492 = vmatpush1.msra.mxu0 0.0
      %493 = vmatprep.subr.mxu0 0.0
      %494 = vmatpush1.msra.mxu0 0.0
      %495 = vmatprep.subr.mxu0 0.0
      %496 = vmatpush1.msra.mxu0 0.0
      %497 = vmatprep.subr.mxu0 0.0
      %498 = vmatpush1.msra.mxu0 0.0
      %499 = vmatprep.mubr.f32.mxu0 0.0
      %500 = vmatmul.mubr.f32.gmra.mrb[0].mxu0 %v433
      %v501 = vpop.f32.mrb[0].mxu0
      %v502 = vadd.f32 %v430, %v501
      %v503 = vpop.f32.mrb[0].mxu0
      %504 = vdwg.mxu0
      %s505 = scalar_lea.vmem [#allocation3], %s39
      %vm506 = vcmask 57344
      %507 = vst.msk [vmem:[%s505] sm:$0x1] %vm506, %v502
    $region34: #{tpu_custom_call.1} parent=1 // loop_footer
      %s43 = sadd.s32 1, %s39
    $region35: #{tpu_custom_call.1} parent=1 // loop_footer_branch
      %38 = sbr.rel target = $region31
    $region36: #{tpu_custom_call.1} parent=1 // loop_exit
      _
    // Predicated region
    $region37: #{tpu_custom_call.1} parent=1 // pred_check
      _
    $region38: #{tpu_custom_call.1} parent=1 // pred_check_branch
      %509 = sbr.rel (0) target = $region40
    $region39: #{tpu_custom_call.1} parent=1 // pred_region
      %s511 = ssub.s32 32, 32
      %512 = vsyncadd [#allocation4], %s511
      %s514 = sshll.u32 [#allocation3], 4
      %s515 = int_to_ptr.vmem [resolvable:$true] %s514
      %517 = dma.vmem_to_hbm [thread:$0]  %s515, 32, %s7, [#allocation4]
    $region40: #{tpu_custom_call.1} parent=1 // pred_fallthru
      _
    // Predicated region
    $region41: #{tpu_custom_call.1} parent=1 // pred_check
      _
    $region42: #{tpu_custom_call.1} parent=1 // pred_check_branch
      %519 = sbr.rel (0) target = $region44
    $region43: #{tpu_custom_call.1} parent=1 // pred_region
      %520 = dma.done [#allocation4], 32
    $region44: #{tpu_custom_call.1} parent=1 // pred_fallthru
      _
    %521 = vsyncpa [#allocation4], 1

</llo_original>
